<compile_context>
chip_gen: v7x
topology: tpu7x:2x2x1
jax: 0.10.0
libtpu: 0.0.40
codegen_flags: <defaults>
</compile_context>

<pallas_src>
import jax
import jax.numpy as jnp
from jax import lax
from jax.experimental import pallas as pl
from jax.experimental.pallas import tpu as pltpu


def _round_up(x, m):
    return ((x + m - 1) // m) * m


def _choose_fold(input_dim, inner_dim, output_dim,
                 itemsize=4, max_weight_bytes=4 << 20):
    """Fold factor F so that F*output_dim fills the 128-lane vregs, capped so
    the block-diagonal (F^2-sized) resident weights stay small in VMEM."""
    if output_dim >= 128 or 128 % output_dim != 0:
        return 1
    f = 128 // output_dim
    while f > 1:
        w_bytes = (f * f) * (input_dim * inner_dim + inner_dim * output_dim) * itemsize
        if w_bytes <= max_weight_bytes:
            break
        f //= 2
    return max(f, 1)


def _pick_tile_rows(m_f, in_f, inner_f, out_f, itemsize=4, vmem_budget=12 << 20):
    """Largest folded-row tile (multiple of 8) fitting the VMEM budget:
    2x double-buffered x tile + 2x out tile + f32 intermediates + resident W."""
    weight_bytes = 2 * itemsize * (inner_f * in_f + out_f * inner_f + inner_f + out_f)
    avail = max(vmem_budget - weight_bytes, 1 << 20)
    per_row = itemsize * (2 * in_f + 2 * out_f) + 4 * (inner_f + out_f)
    tm = avail // max(per_row, 1)
    tm = max(8, min(1024, (tm // 8) * 8))
    tm = min(tm, _round_up(m_f, 8))
    return tm


def _mlp_kernel(x_ref, w1_ref, b1_ref, w2_ref, b2_ref, o_ref):
    # x_ref : (TM, F*input_dim)            streamed, double-buffered
    # w1_ref: (F*inner_dim, F*input_dim)   VMEM-resident (PyTorch (out,in) layout)
    # b1_ref: (1, F*inner_dim)
    # w2_ref: (F*output_dim, F*inner_dim)  VMEM-resident
    # b2_ref: (1, F*output_dim)
    # o_ref : (TM, F*output_dim)           lane-dense output tile
    x = x_ref[...]
    # Contract dim 1 of both operands: x @ W1^T without any wrapper transpose.
    h = lax.dot_general(x, w1_ref[...],
                        dimension_numbers=(((1,), (1,)), ((), ())),
                        preferred_element_type=jnp.float32)
    h = jnp.tanh(h + b1_ref[...])          # EUP tanh, f32
    y = lax.dot_general(h, w2_ref[...],
                        dimension_numbers=(((1,), (1,)), ((), ())),
                        preferred_element_type=jnp.float32)
    o_ref[...] = (y + b2_ref[...]).astype(o_ref.dtype)


def dropout_output_layer(features, w1, b1, w2, b2):
    """features: (..., input_dim) float32.
    w1: (inner_dim, input_dim), b1: (inner_dim,)   -- PyTorch Linear layout
    w2: (output_dim, inner_dim), b2: (output_dim,)
    Returns (..., output_dim)."""
    input_dim = features.shape[-1]
    inner_dim = w1.shape[0]
    output_dim = w2.shape[0]

    lead_shape = features.shape[:-1]
    x2d = features.reshape(-1, input_dim)
    m = x2d.shape[0]

    fold = _choose_fold(input_dim, inner_dim, output_dim)
    in_f, inner_f, out_f = fold * input_dim, fold * inner_dim, fold * output_dim

    # Block-diagonal folded weights, keeping the PyTorch (out, in) orientation.
    # In production these would be prepared once, not per call.
    if fold > 1:
        eye = jnp.eye(fold, dtype=w1.dtype)
        w1_f = jnp.kron(eye, w1)                     # (inner_f, in_f)
        w2_f = jnp.kron(eye, w2)                     # (out_f, inner_f)
        b1_f = jnp.tile(b1, fold).reshape(1, inner_f)
        b2_f = jnp.tile(b2, fold).reshape(1, out_f)
    else:
        w1_f, w2_f = w1, w2
        b1_f = b1.reshape(1, inner_f)
        b2_f = b2.reshape(1, out_f)

    # Fold rows into lanes and pad rows so the grid tiles evenly.
    m_f = pl.cdiv(m, fold)
    tile_rows = _pick_tile_rows(m_f, in_f, inner_f, out_f)
    m_f_pad = _round_up(max(m_f, 1), tile_rows)
    total_rows = m_f_pad * fold
    if total_rows > m:
        x2d = jnp.pad(x2d, ((0, total_rows - m), (0, 0)))
    x_f = x2d.reshape(m_f_pad, in_f)                 # free row-major reshape

    grid = (m_f_pad // tile_rows,)

    out_f_arr = pl.pallas_call(
        _mlp_kernel,
        out_shape=jax.ShapeDtypeStruct((m_f_pad, out_f), features.dtype),
        grid_spec=pltpu.PrefetchScalarGridSpec(
            num_scalar_prefetch=0,
            grid=grid,
            in_specs=[
                pl.BlockSpec((tile_rows, in_f), lambda i: (i, 0)),   # streamed x
                pl.BlockSpec((inner_f, in_f), lambda i: (0, 0)),     # resident W1
                pl.BlockSpec((1, inner_f), lambda i: (0, 0)),        # resident b1
                pl.BlockSpec((out_f, inner_f), lambda i: (0, 0)),    # resident W2
                pl.BlockSpec((1, out_f), lambda i: (0, 0)),          # resident b2
            ],
            out_specs=pl.BlockSpec((tile_rows, out_f), lambda i: (i, 0)),
        ),
        compiler_params=pltpu.CompilerParams(
            dimension_semantics=("parallel",)),      # rows are independent
    )(x_f, w1_f, b1_f, w2_f, b2_f)

    out2d = out_f_arr.reshape(m_f_pad * fold, output_dim)[:m]
    return out2d.reshape(*lead_shape, output_dim)


if __name__ == "__main__":
    # Small shapes consistent with the module: batch=2, seq=8, hidden dims.
    batch, seq = 2, 8
    input_dim, inner_dim, output_dim = 32, 32, 16

    key = jax.random.PRNGKey(0)
    k_x, k_w1, k_b1, k_w2, k_b2 = jax.random.split(key, 5)

    features = jax.random.normal(k_x, (batch, seq, input_dim), jnp.float32)
    # Deterministic synthetic parameters (PyTorch Linear shapes: (out, in)).
    w1 = jax.random.normal(k_w1, (inner_dim, input_dim), jnp.float32) * 0.1
    b1 = jax.random.normal(k_b1, (inner_dim,), jnp.float32) * 0.1
    w2 = jax.random.normal(k_w2, (output_dim, inner_dim), jnp.float32) * 0.1
    b2 = jax.random.normal(k_b2, (output_dim,), jnp.float32) * 0.1

    out = dropout_output_layer(features, w1, b1, w2, b2)
    out = jax.block_until_ready(out)

    # Pure-JAX reference (dropout p=0 is identity).
    ref = jnp.tanh(features @ w1.T + b1) @ w2.T + b2
    assert out.shape == (batch, seq, output_dim)
    assert jnp.allclose(out, ref, atol=1e-5, rtol=1e-5)

    print("KERNEL_OK")
</pallas_src>

<mosaic_0001>
module attributes {stable_mosaic.version = 11 : i64} {
  func.func @_mlp_kernel(%arg0: i32, %arg1: memref<8x256xf32, #tpu.memory_space<vmem>>, %arg2: memref<256x256xf32, #tpu.memory_space<vmem>>, %arg3: memref<1x256xf32, #tpu.memory_space<vmem>>, %arg4: memref<128x256xf32, #tpu.memory_space<vmem>>, %arg5: memref<1x128xf32, #tpu.memory_space<vmem>>, %arg6: memref<8x128xf32, #tpu.memory_space<vmem>>) attributes {dimension_semantics = [#tpu.dimension_semantics<parallel>], iteration_bounds = array<i64: 1>, scalar_prefetch = 0 : i64, scratch_operands = 0 : i64, tpu.core_type = #tpu.core_type<tc>, window_params = [{transform_indices = @transform_0, window_bounds = array<i64: 8, 256>}, {pipeline_mode = #tpu.pipeline_mode<synchronous>, transform_indices = @transform_1, window_bounds = array<i64: 256, 256>}, {pipeline_mode = #tpu.pipeline_mode<synchronous>, transform_indices = @transform_2, window_bounds = array<i64: 1, 256>}, {pipeline_mode = #tpu.pipeline_mode<synchronous>, transform_indices = @transform_3, window_bounds = array<i64: 128, 256>}, {pipeline_mode = #tpu.pipeline_mode<synchronous>, transform_indices = @transform_4, window_bounds = array<i64: 1, 128>}, {transform_indices = @transform_5, window_bounds = array<i64: 8, 128>}]} {
    %c0 = arith.constant 0 : index
    %c0_0 = arith.constant 0 : index
    %0 = vector.load %arg1[%c0, %c0_0] : memref<8x256xf32, #tpu.memory_space<vmem>>, vector<8x256xf32>
    %c0_1 = arith.constant 0 : index
    %c0_2 = arith.constant 0 : index
    %1 = vector.load %arg2[%c0_1, %c0_2] : memref<256x256xf32, #tpu.memory_space<vmem>>, vector<256x256xf32>
    %cst = arith.constant dense<0.000000e+00> : vector<8x256xf32>
    %2 = tpu.matmul %0, %1, %cst {dimension_numbers = #tpu.dot_dimension_numbers<[1], [1], [0], [0], [0, 0, 1, 0], [], []>} : vector<8x256xf32>, vector<256x256xf32>, vector<8x256xf32> -> vector<8x256xf32>
    %c0_3 = arith.constant 0 : index
    %c0_4 = arith.constant 0 : index
    %3 = vector.load %arg3[%c0_3, %c0_4] : memref<1x256xf32, #tpu.memory_space<vmem>>, vector<1x256xf32>
    %4 = vector.broadcast %3 : vector<1x256xf32> to vector<8x256xf32>
    %5 = arith.addf %2, %4 : vector<8x256xf32>
    %6 = math.tanh %5 : vector<8x256xf32>
    %c0_5 = arith.constant 0 : index
    %c0_6 = arith.constant 0 : index
    %7 = vector.load %arg4[%c0_5, %c0_6] : memref<128x256xf32, #tpu.memory_space<vmem>>, vector<128x256xf32>
    %cst_7 = arith.constant dense<0.000000e+00> : vector<8x128xf32>
    %8 = tpu.matmul %6, %7, %cst_7 {dimension_numbers = #tpu.dot_dimension_numbers<[1], [1], [0], [0], [0, 0, 1, 0], [], []>} : vector<8x256xf32>, vector<128x256xf32>, vector<8x128xf32> -> vector<8x128xf32>
    %c0_8 = arith.constant 0 : index
    %c0_9 = arith.constant 0 : index
    %9 = vector.load %arg5[%c0_8, %c0_9] : memref<1x128xf32, #tpu.memory_space<vmem>>, vector<1x128xf32>
    %10 = vector.broadcast %9 : vector<1x128xf32> to vector<8x128xf32>
    %11 = arith.addf %8, %10 : vector<8x128xf32>
    %c0_10 = arith.constant 0 : index
    %c0_11 = arith.constant 0 : index
    %12 = vector.load %arg6[%c0_10, %c0_11] : memref<8x128xf32, #tpu.memory_space<vmem>>, vector<8x128xf32>
    tpu.vector_store %arg6[%c0_10, %c0_11], %11 {strides = array<i32>} : memref<8x128xf32, #tpu.memory_space<vmem>>, vector<8x128xf32>,
    return
  }
  func.func @transform_0(%arg0: i32) -> (i32, i32) {
    %c0_i32 = arith.constant 0 : i32
    %c0_i32_0 = arith.constant 0 : i32
    return %arg0, %c0_i32 : i32, i32
  }
  func.func @transform_1(%arg0: i32) -> (i32, i32) {
    %c0_i32 = arith.constant 0 : i32
    %c0_i32_0 = arith.constant 0 : i32
    %c0_i32_1 = arith.constant 0 : i32
    return %c0_i32, %c0_i32_0 : i32, i32
  }
  func.func @transform_2(%arg0: i32) -> (i32, i32) {
    %c0_i32 = arith.constant 0 : i32
    %c0_i32_0 = arith.constant 0 : i32
    %c0_i32_1 = arith.constant 0 : i32
    return %c0_i32, %c0_i32_0 : i32, i32
  }
  func.func @transform_3(%arg0: i32) -> (i32, i32) {
    %c0_i32 = arith.constant 0 : i32
    %c0_i32_0 = arith.constant 0 : i32
    %c0_i32_1 = arith.constant 0 : i32
    return %c0_i32, %c0_i32_0 : i32, i32
  }
  func.func @transform_4(%arg0: i32) -> (i32, i32) {
    %c0_i32 = arith.constant 0 : i32
    %c0_i32_0 = arith.constant 0 : i32
    %c0_i32_1 = arith.constant 0 : i32
    return %c0_i32, %c0_i32_0 : i32, i32
  }
  func.func @transform_5(%arg0: i32) -> (i32, i32) {
    %c0_i32 = arith.constant 0 : i32
    %c0_i32_0 = arith.constant 0 : i32
    return %arg0, %c0_i32 : i32, i32
  }
}

</mosaic_0001>

<llo_original>
// kernel: tpu_custom_call.1
$region0: #{tpu_custom_call.1}
  #allocation0 [shape = 'u32[]', space=smem, size = 0x4, offset = 0x4, fixed_abs, tag = 'smem constant byte address 0x4 - core index']
  #allocation1 [shape = 'u32[144,128]{1,0:T(1,128)}', space=vmem, size = 0x12000, scoped, tag = 'internal scratch']
  %s0 = inlined_call_operand.hbm [shape: f32[8,256], index: 0, kind: input, shape index: {}]
  %s1 = inlined_call_operand.hbm [shape: f32[256,256], index: 1, kind: input, shape index: {}]
  %s2 = inlined_call_operand.vmem [shape: f32[1,256], index: 2, kind: input, shape index: {}]
  %s3 = inlined_call_operand.hbm [shape: f32[128,256], index: 3, kind: input, shape index: {}]
  %s4 = inlined_call_operand.vmem [shape: f32[1,128], index: 4, kind: input, shape index: {}]
  %s5 = inlined_call_operand.hbm [shape: f32[8,128], index: 5, kind: output, shape index: {}]
  %s6 = sld [smem:[#allocation0]]
  $region42: #{tpu_custom_call.1} parent=0
    _
  %s8 = ssub.s32 1, %s6
  %s9 = scalar_select 0, %s8, %s6
  $region1: #{tpu_custom_call.1} parent=0
    #allocation2 [shape = 'u8[8192]{0}', space=vmem, size = 0x2000, scoped, tag = 'input window, operand 0, single buffered']
    #allocation3 [shape = 's32[1]{0}', space=sflag, size = 0x4, scoped, tag = 'scoped memory for tpu_custom_call.1']
    #allocation4 [shape = 's32[1]{0}', space=sflag, size = 0x4, scoped, tag = 'scoped memory for tpu_custom_call.1']
    #allocation5 [shape = 'u8[262144]{0}', space=vmem, size = 0x40000, scoped, tag = 'input window, operand 1, single buffered']
    #allocation6 [shape = 's32[1]{0}', space=sflag, size = 0x4, scoped, tag = 'scoped memory for tpu_custom_call.1']
    #allocation7 [shape = 'u8[131072]{0}', space=vmem, size = 0x20000, scoped, tag = 'input window, operand 3, single buffered']
    #allocation8 [shape = 'u8[4096]{0}', space=vmem, size = 0x1000, scoped, tag = 'output window, operand 0, single buffered']
    %10 = vsyncpa [#allocation3], 0
    %11 = vsyncpa [#allocation6], 0
    %12 = vsyncpa [#allocation4], 0
    // Predicated region
    $region2: #{tpu_custom_call.1} parent=1 // pred_check
      _
    $region3: #{tpu_custom_call.1} parent=1 // pred_check_branch
      %14 = sbr.rel (0) target = $region5
    $region4: #{tpu_custom_call.1} parent=1 // pred_region
      %s16 = ssub.s32 256, 256
      %17 = vsyncadd [#allocation3], %s16
      %s19 = sshll.u32 [#allocation2], 4
      %s20 = int_to_ptr.vmem [resolvable:$true] %s19
      %22 = dma.hbm_to_vmem [thread:$0]  %s0, 256, %s20, [#allocation3]
    $region5: #{tpu_custom_call.1} parent=1 // pred_fallthru
      _
    // Predicated region
    $region6: #{tpu_custom_call.1} parent=1 // pred_check
      _
    $region7: #{tpu_custom_call.1} parent=1 // pred_check_branch
      %24 = sbr.rel (0) target = $region9
    $region8: #{tpu_custom_call.1} parent=1 // pred_region
      %s26 = ssub.s32 8192, 8192
      %27 = vsyncadd [#allocation6], %s26
      %s28 = sshll.u32 [#allocation5], 4
      %s29 = int_to_ptr.vmem [resolvable:$true] %s28
      %34 = dma.hbm_to_vmem [thread:$0]  %s1, 8192, %s29, [#allocation6], 256, 256, 16
    $region9: #{tpu_custom_call.1} parent=1 // pred_fallthru
      _
    // Predicated region
    $region10: #{tpu_custom_call.1} parent=1 // pred_check
      _
    $region11: #{tpu_custom_call.1} parent=1 // pred_check_branch
      %36 = sbr.rel (0) target = $region13
    $region12: #{tpu_custom_call.1} parent=1 // pred_region
      _
    $region13: #{tpu_custom_call.1} parent=1 // pred_fallthru
      _
    // Predicated region
    $region14: #{tpu_custom_call.1} parent=1 // pred_check
      _
    $region15: #{tpu_custom_call.1} parent=1 // pred_check_branch
      %38 = sbr.rel (0) target = $region17
    $region16: #{tpu_custom_call.1} parent=1 // pred_region
      %s40 = ssub.s32 4096, 4096
      %41 = vsyncadd [#allocation6], %s40
      %s42 = sshll.u32 [#allocation7], 4
      %s43 = int_to_ptr.vmem [resolvable:$true] %s42
      %48 = dma.hbm_to_vmem [thread:$0]  %s3, 4096, %s43, [#allocation6], 256, 256, 16
    $region17: #{tpu_custom_call.1} parent=1 // pred_fallthru
      _
    // Predicated region
    $region18: #{tpu_custom_call.1} parent=1 // pred_check
      _
    $region19: #{tpu_custom_call.1} parent=1 // pred_check_branch
      %50 = sbr.rel (0) target = $region21
    $region20: #{tpu_custom_call.1} parent=1 // pred_region
      _
    $region21: #{tpu_custom_call.1} parent=1 // pred_fallthru
      _
    // Predicated region
    $region22: #{tpu_custom_call.1} parent=1 // pred_check
      _
    $region23: #{tpu_custom_call.1} parent=1 // pred_check_branch
      %52 = sbr.rel (0) target = $region25
    $region24: #{tpu_custom_call.1} parent=1 // pred_region
      %53 = dma.done [#allocation3], 256
    $region25: #{tpu_custom_call.1} parent=1 // pred_fallthru
      _
    // Predicated region
    $region26: #{tpu_custom_call.1} parent=1 // pred_check
      _
    $region27: #{tpu_custom_call.1} parent=1 // pred_check_branch
      %55 = sbr.rel (0) target = $region29
    $region28: #{tpu_custom_call.1} parent=1 // pred_region
      %56 = dma.done [#allocation6], 8192
    $region29: #{tpu_custom_call.1} parent=1 // pred_fallthru
      _
    // Predicated region
    $region30: #{tpu_custom_call.1} parent=1 // pred_check
      _
    $region31: #{tpu_custom_call.1} parent=1 // pred_check_branch
      %58 = sbr.rel (0) target = $region33
    $region32: #{tpu_custom_call.1} parent=1 // pred_region
      %59 = dma.done [#allocation6], 4096
    $region33: #{tpu_custom_call.1} parent=1 // pred_fallthru
      _
    %v60 = vld [vmem:[#allocation2] sm:$0xff]
    %v61 = vld [vmem:[#allocation2 + $0x8] sm:$0xff]
    %v62 = vld [vmem:[#allocation5] sm:$0xff]
    %v63 = vld [vmem:[#allocation5 + $0x8] sm:$0xff]
    %v64 = vld [vmem:[#allocation5 + $0x10] sm:$0xff]
    %v65 = vld [vmem:[#allocation5 + $0x18] sm:$0xff]
    %v66 = vld [vmem:[#allocation5 + $0x20] sm:$0xff]
    %v67 = vld [vmem:[#allocation5 + $0x28] sm:$0xff]
    %v68 = vld [vmem:[#allocation5 + $0x30] sm:$0xff]
    %v69 = vld [vmem:[#allocation5 + $0x38] sm:$0xff]
    %v70 = vld [vmem:[#allocation5 + $0x40] sm:$0xff]
    %v71 = vld [vmem:[#allocation5 + $0x48] sm:$0xff]
    %v72 = vld [vmem:[#allocation5 + $0x50] sm:$0xff]
    %v73 = vld [vmem:[#allocation5 + $0x58] sm:$0xff]
    %v74 = vld [vmem:[#allocation5 + $0x60] sm:$0xff]
    %v75 = vld [vmem:[#allocation5 + $0x68] sm:$0xff]
    %v76 = vld [vmem:[#allocation5 + $0x70] sm:$0xff]
    %v77 = vld [vmem:[#allocation5 + $0x78] sm:$0xff]
    %v78 = vld [vmem:[#allocation5 + $0x80] sm:$0xff]
    %v79 = vld [vmem:[#allocation5 + $0x88] sm:$0xff]
    %v80 = vld [vmem:[#allocation5 + $0x90] sm:$0xff]
    %v81 = vld [vmem:[#allocation5 + $0x98] sm:$0xff]
    %v82 = vld [vmem:[#allocation5 + $0xa0] sm:$0xff]
    %v83 = vld [vmem:[#allocation5 + $0xa8] sm:$0xff]
    %v84 = vld [vmem:[#allocation5 + $0xb0] sm:$0xff]
    %v85 = vld [vmem:[#allocation5 + $0xb8] sm:$0xff]
    %v86 = vld [vmem:[#allocation5 + $0xc0] sm:$0xff]
    %v87 = vld [vmem:[#allocation5 + $0xc8] sm:$0xff]
    %v88 = vld [vmem:[#allocation5 + $0xd0] sm:$0xff]
    %v89 = vld [vmem:[#allocation5 + $0xd8] sm:$0xff]
    %v90 = vld [vmem:[#allocation5 + $0xe0] sm:$0xff]
    %v91 = vld [vmem:[#allocation5 + $0xe8] sm:$0xff]
    %v92 = vld [vmem:[#allocation5 + $0xf0] sm:$0xff]
    %v93 = vld [vmem:[#allocation5 + $0xf8] sm:$0xff]
    %v94 = vld [vmem:[#allocation5 + $0x100] sm:$0xff]
    %v95 = vld [vmem:[#allocation5 + $0x108] sm:$0xff]
    %v96 = vld [vmem:[#allocation5 + $0x110] sm:$0xff]
    %v97 = vld [vmem:[#allocation5 + $0x118] sm:$0xff]
    %v98 = vld [vmem:[#allocation5 + $0x120] sm:$0xff]
    %v99 = vld [vmem:[#allocation5 + $0x128] sm:$0xff]
    %v100 = vld [vmem:[#allocation5 + $0x130] sm:$0xff]
    %v101 = vld [vmem:[#allocation5 + $0x138] sm:$0xff]
    %v102 = vld [vmem:[#allocation5 + $0x140] sm:$0xff]
    %v103 = vld [vmem:[#allocation5 + $0x148] sm:$0xff]
    %v104 = vld [vmem:[#allocation5 + $0x150] sm:$0xff]
    %v105 = vld [vmem:[#allocation5 + $0x158] sm:$0xff]
    %v106 = vld [vmem:[#allocation5 + $0x160] sm:$0xff]
    %v107 = vld [vmem:[#allocation5 + $0x168] sm:$0xff]
    %v108 = vld [vmem:[#allocation5 + $0x170] sm:$0xff]
    %v109 = vld [vmem:[#allocation5 + $0x178] sm:$0xff]
    %v110 = vld [vmem:[#allocation5 + $0x180] sm:$0xff]
    %v111 = vld [vmem:[#allocation5 + $0x188] sm:$0xff]
    %v112 = vld [vmem:[#allocation5 + $0x190] sm:$0xff]
    %v113 = vld [vmem:[#allocation5 + $0x198] sm:$0xff]
    %v114 = vld [vmem:[#allocation5 + $0x1a0] sm:$0xff]
    %v115 = vld [vmem:[#allocation5 + $0x1a8] sm:$0xff]
    %v116 = vld [vmem:[#allocation5 + $0x1b0] sm:$0xff]
    %v117 = vld [vmem:[#allocation5 + $0x1b8] sm:$0xff]
    %v118 = vld [vmem:[#allocation5 + $0x1c0] sm:$0xff]
    %v119 = vld [vmem:[#allocation5 + $0x1c8] sm:$0xff]
    %v120 = vld [vmem:[#allocation5 + $0x1d0] sm:$0xff]
    %v121 = vld [vmem:[#allocation5 + $0x1d8] sm:$0xff]
    %v122 = vld [vmem:[#allocation5 + $0x1e0] sm:$0xff]
    %v123 = vld [vmem:[#allocation5 + $0x1e8] sm:$0xff]
    %v124 = vld [vmem:[#allocation5 + $0x1f0] sm:$0xff]
    %v125 = vld [vmem:[#allocation5 + $0x1f8] sm:$0xff]
    %v126 = vld [vmem:[%s2] sm:$0x3]
    %v128 = vlaneseq
    %v129 = vshrl.u32 %v128, 7
    %v130 = vsub.s32 0, %v129
    %v131 = vrot.slane %v126, %v130
    %v132 = vlaneseq
    %v133 = vshrl.u32 %v132, 7
    %v134 = vsub.s32 1, %v133
    %v135 = vrot.slane %v126, %v134
    %138 = vmatprep.subr.mxu0 %v63
    %139 = vmatpush1.xpose.msra.mxu0 %v62
    %140 = vmatprep.subr.mxu0 %v65
    %141 = vmatpush1.xpose.msra.mxu0 %v64
    %142 = vmatprep.subr.mxu0 %v67
    %143 = vmatpush1.xpose.msra.mxu0 %v66
    %144 = vmatprep.subr.mxu0 %v69
    %145 = vmatpush1.xpose.msra.mxu0 %v68
    %146 = vmatprep.subr.mxu0 %v71
    %147 = vmatpush1.xpose.msra.mxu0 %v70
    %148 = vmatprep.subr.mxu0 %v73
    %149 = vmatpush1.xpose.msra.mxu0 %v72
    %150 = vmatprep.subr.mxu0 %v75
    %151 = vmatpush1.xpose.msra.mxu0 %v74
    %152 = vmatprep.subr.mxu0 %v77
    %153 = vmatpush1.xpose.msra.mxu0 %v76
    %154 = vmatprep.subr.mxu0 %v79
    %155 = vmatpush1.xpose.msra.mxu0 %v78
    %156 = vmatprep.subr.mxu0 %v81
    %157 = vmatpush1.xpose.msra.mxu0 %v80
    %158 = vmatprep.subr.mxu0 %v83
    %159 = vmatpush1.xpose.msra.mxu0 %v82
    %160 = vmatprep.subr.mxu0 %v85
    %161 = vmatpush1.xpose.msra.mxu0 %v84
    %162 = vmatprep.subr.mxu0 %v87
    %163 = vmatpush1.xpose.msra.mxu0 %v86
    %164 = vmatprep.subr.mxu0 %v89
    %165 = vmatpush1.xpose.msra.mxu0 %v88
    %166 = vmatprep.subr.mxu0 %v91
    %167 = vmatpush1.xpose.msra.mxu0 %v90
    %168 = vmatprep.subr.mxu0 %v93
    %169 = vmatpush1.xpose.msra.mxu0 %v92
    %170 = vmatprep.subr.mxu0 %v95
    %171 = vmatpush1.xpose.msra.mxu0 %v94
    %172 = vmatprep.subr.mxu0 %v97
    %173 = vmatpush1.xpose.msra.mxu0 %v96
    %174 = vmatprep.subr.mxu0 %v99
    %175 = vmatpush1.xpose.msra.mxu0 %v98
    %176 = vmatprep.subr.mxu0 %v101
    %177 = vmatpush1.xpose.msra.mxu0 %v100
    %178 = vmatprep.subr.mxu0 %v103
    %179 = vmatpush1.xpose.msra.mxu0 %v102
    %180 = vmatprep.subr.mxu0 %v105
    %181 = vmatpush1.xpose.msra.mxu0 %v104
    %182 = vmatprep.subr.mxu0 %v107
    %183 = vmatpush1.xpose.msra.mxu0 %v106
    %184 = vmatprep.subr.mxu0 %v109
    %185 = vmatpush1.xpose.msra.mxu0 %v108
    %186 = vmatprep.subr.mxu0 %v111
    %187 = vmatpush1.xpose.msra.mxu0 %v110
    %188 = vmatprep.subr.mxu0 %v113
    %189 = vmatpush1.xpose.msra.mxu0 %v112
    %190 = vmatprep.subr.mxu0 %v115
    %191 = vmatpush1.xpose.msra.mxu0 %v114
    %192 = vmatprep.subr.mxu0 %v117
    %193 = vmatpush1.xpose.msra.mxu0 %v116
    %194 = vmatprep.subr.mxu0 %v119
    %195 = vmatpush1.xpose.msra.mxu0 %v118
    %196 = vmatprep.subr.mxu0 %v121
    %197 = vmatpush1.xpose.msra.mxu0 %v120
    %198 = vmatprep.subr.mxu0 %v123
    %199 = vmatpush1.xpose.msra.mxu0 %v122
    %200 = vmatprep.subr.mxu0 %v125
    %201 = vmatpush1.xpose.msra.mxu0 %v124
    %202 = vmatprep.mubr.f32.mxu0 %v61
    %203 = vmatmul.mubr.f32.gmra.mrb[0].mxu0 %v60
    %v204 = vpop.f32.mrb[0].mxu0
    %v205 = vadd.f32 %v131, %v204
    %v206 = vpop.f32.mrb[0].mxu0
    %v207 = vadd.f32 %v135, %v206
    %208 = vdwg.mxu0
    %v209 = vtanh.pop %v205
    %v210 = vtanh.pop %v207
    %v211 = vld [vmem:[#allocation7] sm:$0xff]
    %v212 = vld [vmem:[#allocation7 + $0x8] sm:$0xff]
    %v213 = vld [vmem:[#allocation7 + $0x10] sm:$0xff]
    %v214 = vld [vmem:[#allocation7 + $0x18] sm:$0xff]
    %v215 = vld [vmem:[#allocation7 + $0x20] sm:$0xff]
    %v216 = vld [vmem:[#allocation7 + $0x28] sm:$0xff]
    %v217 = vld [vmem:[#allocation7 + $0x30] sm:$0xff]
    %v218 = vld [vmem:[#allocation7 + $0x38] sm:$0xff]
    %v219 = vld [vmem:[#allocation7 + $0x40] sm:$0xff]
    %v220 = vld [vmem:[#allocation7 + $0x48] sm:$0xff]
    %v221 = vld [vmem:[#allocation7 + $0x50] sm:$0xff]
    %v222 = vld [vmem:[#allocation7 + $0x58] sm:$0xff]
    %v223 = vld [vmem:[#allocation7 + $0x60] sm:$0xff]
    %v224 = vld [vmem:[#allocation7 + $0x68] sm:$0xff]
    %v225 = vld [vmem:[#allocation7 + $0x70] sm:$0xff]
    %v226 = vld [vmem:[#allocation7 + $0x78] sm:$0xff]
    %v227 = vld [vmem:[#allocation7 + $0x80] sm:$0xff]
    %v228 = vld [vmem:[#allocation7 + $0x88] sm:$0xff]
    %v229 = vld [vmem:[#allocation7 + $0x90] sm:$0xff]
    %v230 = vld [vmem:[#allocation7 + $0x98] sm:$0xff]
    %v231 = vld [vmem:[#allocation7 + $0xa0] sm:$0xff]
    %v232 = vld [vmem:[#allocation7 + $0xa8] sm:$0xff]
    %v233 = vld [vmem:[#allocation7 + $0xb0] sm:$0xff]
    %v234 = vld [vmem:[#allocation7 + $0xb8] sm:$0xff]
    %v235 = vld [vmem:[#allocation7 + $0xc0] sm:$0xff]
    %v236 = vld [vmem:[#allocation7 + $0xc8] sm:$0xff]
    %v237 = vld [vmem:[#allocation7 + $0xd0] sm:$0xff]
    %v238 = vld [vmem:[#allocation7 + $0xd8] sm:$0xff]
    %v239 = vld [vmem:[#allocation7 + $0xe0] sm:$0xff]
    %v240 = vld [vmem:[#allocation7 + $0xe8] sm:$0xff]
    %v241 = vld [vmem:[#allocation7 + $0xf0] sm:$0xff]
    %v242 = vld [vmem:[#allocation7 + $0xf8] sm:$0xff]
    %v243 = vld [vmem:[%s4] sm:$0x1]
    %v245 = vlaneseq
    %v246 = vshrl.u32 %v245, 7
    %v247 = vsub.s32 0, %v246
    %v248 = vrot.slane %v243, %v247
    %250 = vmatprep.subr.mxu0 %v212
    %251 = vmatpush1.xpose.msra.mxu0 %v211
    %252 = vmatprep.subr.mxu0 %v214
    %253 = vmatpush1.xpose.msra.mxu0 %v213
    %254 = vmatprep.subr.mxu0 %v216
    %255 = vmatpush1.xpose.msra.mxu0 %v215
    %256 = vmatprep.subr.mxu0 %v218
    %257 = vmatpush1.xpose.msra.mxu0 %v217
    %258 = vmatprep.subr.mxu0 %v220
    %259 = vmatpush1.xpose.msra.mxu0 %v219
    %260 = vmatprep.subr.mxu0 %v222
    %261 = vmatpush1.xpose.msra.mxu0 %v221
    %262 = vmatprep.subr.mxu0 %v224
    %263 = vmatpush1.xpose.msra.mxu0 %v223
    %264 = vmatprep.subr.mxu0 %v226
    %265 = vmatpush1.xpose.msra.mxu0 %v225
    %266 = vmatprep.subr.mxu0 %v228
    %267 = vmatpush1.xpose.msra.mxu0 %v227
    %268 = vmatprep.subr.mxu0 %v230
    %269 = vmatpush1.xpose.msra.mxu0 %v229
    %270 = vmatprep.subr.mxu0 %v232
    %271 = vmatpush1.xpose.msra.mxu0 %v231
    %272 = vmatprep.subr.mxu0 %v234
    %273 = vmatpush1.xpose.msra.mxu0 %v233
    %274 = vmatprep.subr.mxu0 %v236
    %275 = vmatpush1.xpose.msra.mxu0 %v235
    %276 = vmatprep.subr.mxu0 %v238
    %277 = vmatpush1.xpose.msra.mxu0 %v237
    %278 = vmatprep.subr.mxu0 %v240
    %279 = vmatpush1.xpose.msra.mxu0 %v239
    %280 = vmatprep.subr.mxu0 %v242
    %281 = vmatpush1.xpose.msra.mxu0 %v241
    %282 = vmatprep.subr.mxu0 0.0
    %283 = vmatpush1.xpose.msra.mxu0 0.0
    %284 = vmatprep.subr.mxu0 0.0
    %285 = vmatpush1.xpose.msra.mxu0 0.0
    %286 = vmatprep.subr.mxu0 0.0
    %287 = vmatpush1.xpose.msra.mxu0 0.0
    %288 = vmatprep.subr.mxu0 0.0
    %289 = vmatpush1.xpose.msra.mxu0 0.0
    %290 = vmatprep.subr.mxu0 0.0
    %291 = vmatpush1.xpose.msra.mxu0 0.0
    %292 = vmatprep.subr.mxu0 0.0
    %293 = vmatpush1.xpose.msra.mxu0 0.0
    %294 = vmatprep.subr.mxu0 0.0
    %295 = vmatpush1.xpose.msra.mxu0 0.0
    %296 = vmatprep.subr.mxu0 0.0
    %297 = vmatpush1.xpose.msra.mxu0 0.0
    %298 = vmatprep.subr.mxu0 0.0
    %299 = vmatpush1.xpose.msra.mxu0 0.0
    %300 = vmatprep.subr.mxu0 0.0
    %301 = vmatpush1.xpose.msra.mxu0 0.0
    %302 = vmatprep.subr.mxu0 0.0
    %303 = vmatpush1.xpose.msra.mxu0 0.0
    %304 = vmatprep.subr.mxu0 0.0
    %305 = vmatpush1.xpose.msra.mxu0 0.0
    %306 = vmatprep.subr.mxu0 0.0
    %307 = vmatpush1.xpose.msra.mxu0 0.0
    %308 = vmatprep.subr.mxu0 0.0
    %309 = vmatpush1.xpose.msra.mxu0 0.0
    %310 = vmatprep.subr.mxu0 0.0
    %311 = vmatpush1.xpose.msra.mxu0 0.0
    %312 = vmatprep.subr.mxu0 0.0
    %313 = vmatpush1.xpose.msra.mxu0 0.0
    %314 = vmatprep.mubr.f32.mxu0 %v210
    %315 = vmatmul.mubr.f32.gmra.mrb[0].mxu0 %v209
    %v316 = vpop.f32.mrb[0].mxu0
    %v317 = vadd.f32 %v248, %v316
    %v318 = vpop.f32.mrb[0].mxu0
    %319 = vdwg.mxu0
    %320 = vst [vmem:[#allocation8] sm:$0xff] %v317
    // Predicated region
    $region34: #{tpu_custom_call.1} parent=1 // pred_check
      _
    $region35: #{tpu_custom_call.1} parent=1 // pred_check_branch
      %322 = sbr.rel (0) target = $region37
    $region36: #{tpu_custom_call.1} parent=1 // pred_region
      %s324 = ssub.s32 128, 128
      %325 = vsyncadd [#allocation4], %s324
      %s327 = sshll.u32 [#allocation8], 4
      %s328 = int_to_ptr.vmem [resolvable:$true] %s327
      %330 = dma.vmem_to_hbm [thread:$0]  %s328, 128, %s5, [#allocation4]
    $region37: #{tpu_custom_call.1} parent=1 // pred_fallthru
      _
    // Predicated region
    $region38: #{tpu_custom_call.1} parent=1 // pred_check
      _
    $region39: #{tpu_custom_call.1} parent=1 // pred_check_branch
      %332 = sbr.rel (0) target = $region41
    $region40: #{tpu_custom_call.1} parent=1 // pred_region
      %333 = dma.done [#allocation4], 128
    $region41: #{tpu_custom_call.1} parent=1 // pred_fallthru
      _
    %334 = vsyncpa [#allocation3], 1
    %335 = vsyncpa [#allocation6], 1
    %336 = vsyncpa [#allocation4], 1

</llo_original>
